<compile_context>
chip_gen: v5e
topology: v5e:2x2
jax: 0.10.0
libtpu: 0.0.40
codegen_flags: <defaults>
</compile_context>

<pallas_src>
import jax
import jax.numpy as jnp
from jax.experimental import pallas as pl
from jax.experimental.pallas import tpu as pltpu


def _round_up(a, b):
    return (a + b - 1) // b * b


def _logreg_kernel(x_ref, w_ref, b_ref, o_ref, acc_ref):
    k = pl.program_id(1)

    @pl.when(k == 0)
    def _init():
        acc_ref[...] = jnp.zeros_like(acc_ref)

    # (TN, TK) * (1, TK) broadcast multiply (VPU) + lane reduction (XLU) -> (TN, 1).
    # Keeps the MXU out of the picture (the (TN,F)@(F,1) shape would use 1 of its
    # 128/256 output columns); the kernel is HBM-bound either way.
    acc_ref[...] += jnp.sum(x_ref[...] * w_ref[...], axis=-1, keepdims=True)

    @pl.when(k == pl.num_programs(1) - 1)
    def _finalize():
        z = acc_ref[...] + b_ref[0]                     # bias: scalar read from SMEM
        o_ref[...] = jax.nn.sigmoid(z).astype(o_ref.dtype)


def logreg_forward(x, w, b, *, target_tile_bytes=4 << 20):
    """x: (N, F) f32, w: (1, F) f32 (PyTorch layout), b: (1,) f32 -> (N, 1) f32."""
    N, F = x.shape
    x = jnp.asarray(x, jnp.float32)
    w = jnp.asarray(w, jnp.float32).reshape(1, F)
    b = jnp.asarray(b, jnp.float32).reshape(1)

    # Feature (reduction) tiling: single K step unless F is large.
    if F <= 2048:
        tk, Fp = F, F
    else:
        tk = 2048
        Fp = _round_up(F, tk)

    # Batch (row) tiling: largest tile with ~target_tile_bytes of x per buffer,
    # evened out across row tiles so padding waste stays < 8 rows per tile.
    tn_target = max(8, min(32768, (target_tile_bytes // (tk * 4)) // 8 * 8))
    num_row_tiles = max(1, -(-N // tn_target))
    tn = _round_up(-(-N // num_row_tiles), 8)
    Np = _round_up(N, tn)

    if (Np, Fp) != (N, F):
        x = jnp.pad(x, ((0, Np - N), (0, Fp - F)))
        w = jnp.pad(w, ((0, 0), (0, Fp - F)))

    grid = (Np // tn, Fp // tk)

    out = pl.pallas_call(
        _logreg_kernel,
        out_shape=jax.ShapeDtypeStruct((Np, 1), jnp.float32),
        grid=grid,
        in_specs=[
            pl.BlockSpec((tn, tk), lambda i, k: (i, k)),          # x tile (pipelined)
            pl.BlockSpec((1, tk), lambda i, k: (0, k)),           # weight row (resident over i)
            pl.BlockSpec(memory_space=pltpu.MemorySpace.SMEM),    # bias scalar in SMEM
        ],
        out_specs=pl.BlockSpec((tn, 1), lambda i, k: (i, 0)),
        scratch_shapes=[pltpu.VMEM((tn, 1), jnp.float32)],        # f32 accumulator
        compiler_params=pltpu.CompilerParams(
            dimension_semantics=("parallel", "arbitrary"),
        ),
        cost_estimate=pl.CostEstimate(
            flops=2 * N * F,
            transcendentals=N,
            bytes_accessed=4 * (N * F + F + 1 + N),
        ),
    )(x, w, b)

    return out[:N]


def _reference(x, w, b):
    return jax.nn.sigmoid(x @ w.T + b)          # same semantics as torch.sigmoid(linear(x))


if __name__ == "__main__":
    key = jax.random.PRNGKey(0)

    def make_case(key, n, f):
        kx, kw, kb = jax.random.split(key, 3)
        bound = 1.0 / (f ** 0.5)                # mimic nn.Linear's uniform init
        x = jax.random.normal(kx, (n, f), dtype=jnp.float32)
        w = jax.random.uniform(kw, (1, f), minval=-bound, maxval=bound, dtype=jnp.float32)
        b = jax.random.uniform(kb, (1,), minval=-bound, maxval=bound, dtype=jnp.float32)
        return x, w, b

    # Small canonical shape (batch=8, n_input_features=32) + two shapes that
    # exercise row padding and the K-tiled accumulator path.
    cases = [(8, 32), (300, 260), (64, 3000)]
    keys = jax.random.split(key, len(cases))

    for (n, f), ck in zip(cases, keys):
        x, w, b = make_case(ck, n, f)
        y = jax.block_until_ready(logreg_forward(x, w, b))
        y_ref = _reference(x, w, b)
        assert y.shape == (n, 1), f"bad shape for ({n},{f}): {y.shape}"
        assert jnp.allclose(y, y_ref, atol=1e-5, rtol=1e-5), f"mismatch vs reference ({n},{f})"

    print("KERNEL_OK")
</pallas_src>

<mosaic_0001>
module attributes {stable_mosaic.version = 11 : i64} {
  func.func @_logreg_kernel(%arg0: i32, %arg1: i32, %arg2: memref<8x32xf32, #tpu.memory_space<vmem>>, %arg3: memref<1x32xf32, #tpu.memory_space<vmem>>, %arg4: memref<1xf32, #tpu.memory_space<smem>>, %arg5: memref<8x1xf32, #tpu.memory_space<vmem>>, %arg6: memref<8x1xf32, #tpu.memory_space<vmem>>) attributes {dimension_semantics = [#tpu.dimension_semantics<parallel>, #tpu.dimension_semantics<arbitrary>], iteration_bounds = array<i64: 1, 1>, scalar_prefetch = 0 : i64, scratch_operands = 1 : i64, tpu.core_type = #tpu.core_type<tc>, window_params = [{transform_indices = @transform_0, window_bounds = array<i64: 8, 32>}, {transform_indices = @transform_1, window_bounds = array<i64: 1, 32>}, {transform_indices = @transform_2, window_bounds = array<i64: 1>}, {transform_indices = @transform_3, window_bounds = array<i64: 8, 1>}]} {
    %c0_i32 = arith.constant 0 : i32
    %0 = arith.cmpi eq, %arg1, %c0_i32 : i32
    %1 = arith.extui %0 : i1 to i32
    %c0_i32_0 = arith.constant 0 : i32
    %2 = arith.cmpi ne, %1, %c0_i32_0 : i32
    scf.if %2 {
      %cst_10 = arith.constant 0.000000e+00 : f32
      %15 = vector.broadcast %cst_10 : f32 to vector<8x1xf32>
      %c0_11 = arith.constant 0 : index
      %c0_12 = arith.constant 0 : index
      %16 = vector.load %arg6[%c0_11, %c0_12] : memref<8x1xf32, #tpu.memory_space<vmem>>, vector<8x1xf32>
      tpu.vector_store %arg6[%c0_11, %c0_12], %15 {strides = array<i32>} : memref<8x1xf32, #tpu.memory_space<vmem>>, vector<8x1xf32>,
    } else {
    }
    %c0 = arith.constant 0 : index
    %c0_1 = arith.constant 0 : index
    %3 = vector.load %arg6[%c0, %c0_1] : memref<8x1xf32, #tpu.memory_space<vmem>>, vector<8x1xf32>
    %c0_2 = arith.constant 0 : index
    %c0_3 = arith.constant 0 : index
    %4 = vector.load %arg2[%c0_2, %c0_3] : memref<8x32xf32, #tpu.memory_space<vmem>>, vector<8x32xf32>
    %c0_4 = arith.constant 0 : index
    %c0_5 = arith.constant 0 : index
    %5 = vector.load %arg3[%c0_4, %c0_5] : memref<1x32xf32, #tpu.memory_space<vmem>>, vector<1x32xf32>
    %6 = vector.broadcast %5 : vector<1x32xf32> to vector<8x32xf32>
    %7 = arith.mulf %4, %6 : vector<8x32xf32>
    %cst = arith.constant dense<0.000000e+00> : vector<8xf32>
    %8 = vector.multi_reduction <add>, %7, %cst [1] : vector<8x32xf32> to vector<8xf32>
    %9 = vector.shape_cast %8 : vector<8xf32> to vector<8x1xf32>
    %10 = arith.addf %3, %9 : vector<8x1xf32>
    %c0_6 = arith.constant 0 : index
    %c0_7 = arith.constant 0 : index
    %11 = vector.load %arg6[%c0_6, %c0_7] : memref<8x1xf32, #tpu.memory_space<vmem>>, vector<8x1xf32>
    tpu.vector_store %arg6[%c0_6, %c0_7], %10 {strides = array<i32>} : memref<8x1xf32, #tpu.memory_space<vmem>>, vector<8x1xf32>,
    %c0_i32_8 = arith.constant 0 : i32
    %12 = arith.cmpi eq, %arg1, %c0_i32_8 : i32
    %13 = arith.extui %12 : i1 to i32
    %c0_i32_9 = arith.constant 0 : i32
    %14 = arith.cmpi ne, %13, %c0_i32_9 : i32
    scf.if %14 {
      %c0_10 = arith.constant 0 : index
      %c0_11 = arith.constant 0 : index
      %15 = vector.load %arg6[%c0_10, %c0_11] : memref<8x1xf32, #tpu.memory_space<vmem>>, vector<8x1xf32>
      %c0_12 = arith.constant 0 : index
      %16 = memref.load %arg4[%c0_12] : memref<1xf32, #tpu.memory_space<smem>>
      %17 = vector.broadcast %16 : f32 to vector<8x1xf32>
      %18 = arith.addf %15, %17 : vector<8x1xf32>
      %19 = arith.negf %18 : vector<8x1xf32>
      %20 = math.exp %19 : vector<8x1xf32>
      %cst_13 = arith.constant 1.000000e+00 : f32
      %21 = vector.broadcast %cst_13 : f32 to vector<8x1xf32>
      %22 = arith.addf %21, %20 : vector<8x1xf32>
      %23 = arith.divf %21, %22 : vector<8x1xf32>
      %c0_14 = arith.constant 0 : index
      %c0_15 = arith.constant 0 : index
      %24 = vector.load %arg5[%c0_14, %c0_15] : memref<8x1xf32, #tpu.memory_space<vmem>>, vector<8x1xf32>
      tpu.vector_store %arg5[%c0_14, %c0_15], %23 {strides = array<i32>} : memref<8x1xf32, #tpu.memory_space<vmem>>, vector<8x1xf32>,
    } else {
    }
    return
  }
  func.func @transform_0(%arg0: i32, %arg1: i32) -> (i32, i32) {
    %c0_i32 = arith.constant 0 : i32
    return %arg0, %arg1 : i32, i32
  }
  func.func @transform_1(%arg0: i32, %arg1: i32) -> (i32, i32) {
    %c0_i32 = arith.constant 0 : i32
    %c0_i32_0 = arith.constant 0 : i32
    return %c0_i32, %arg1 : i32, i32
  }
  func.func @transform_2(%arg0: i32, %arg1: i32) -> i32 {
    %c0_i32 = arith.constant 0 : i32
    %c0_i32_0 = arith.constant 0 : i32
    return %c0_i32 : i32
  }
  func.func @transform_3(%arg0: i32, %arg1: i32) -> (i32, i32) {
    %c0_i32 = arith.constant 0 : i32
    %c0_i32_0 = arith.constant 0 : i32
    return %arg0, %c0_i32 : i32, i32
  }
}

</mosaic_0001>

<llo_original>
// kernel: tpu_custom_call.1
$region0: #{tpu_custom_call.1}
  #allocation0 [shape = 'u32[]', space=smem, size = 0x4, offset = 0x4, fixed_abs, tag = 'smem constant byte address 0x4 - core index']
  #allocation1 [shape = 'u32[72,128]{1,0:T(1,128)}', space=vmem, size = 0x9000, scoped, tag = 'internal scratch']
  #allocation2 [shape = 'f32[8,1]{1,0:T(8,128)}', space=vmem, size = 0x1000, scoped, tag = 'scratch operand']
  #allocation3 [shape = 'f32[1]{0:T(128)S(6)}', space=smem, size = 0x200, scoped, tag = 'scoped memory for tpu_custom_call.1']
  %s0 = inlined_call_operand.hbm [shape: f32[8,32], index: 0, kind: input, shape index: {}]
  %s1 = inlined_call_operand.vmem [shape: f32[1,32], index: 1, kind: input, shape index: {}]
  %s2 = inlined_call_operand.<no memory space> [shape: f32[1], index: 2, kind: input, shape index: {}]
  %s3 = inlined_call_operand.vmem [shape: f32[8,1], index: 3, kind: output, shape index: {}]
  %s4 = sld [smem:[#allocation0]]
  $region34: #{tpu_custom_call.1} parent=0
    _
  %s6 = ssub.s32 1, %s4
  %s7 = scalar_select 0, %s6, %s4
  %8 = sst [smem:[#allocation3]] %s2
  $region1: #{tpu_custom_call.1} parent=0
    #allocation4 [shape = 'u8[4096]{0}', space=vmem, size = 0x1000, scoped, tag = 'input window, operand 0, single buffered']
    #allocation5 [shape = 's32[1]{0}', space=sflag, size = 0x4, scoped, tag = 'scoped memory for tpu_custom_call.1']
    %9 = vsyncpa [#allocation5], 0
    // Predicated region
    $region2: #{tpu_custom_call.1} parent=1 // pred_check
      _
    $region3: #{tpu_custom_call.1} parent=1 // pred_check_branch
      %11 = sbr.rel (0) target = $region5
    $region4: #{tpu_custom_call.1} parent=1 // pred_region
      %13 = vsyncadd [#allocation5], 0
      %s15 = sshll.u32 %s0, 4
      %s16 = int_to_ptr.hbm [resolvable:$true] %s15
      %s17 = sshll.u32 [#allocation4], 4
      %s18 = int_to_ptr.vmem [resolvable:$true] %s17
      %20 = dma.hbm_to_vmem [thread:$0]  %s16, 128, %s18, [#allocation5]
    $region5: #{tpu_custom_call.1} parent=1 // pred_fallthru
      _
    // Predicated region
    $region6: #{tpu_custom_call.1} parent=1 // pred_check
      _
    $region7: #{tpu_custom_call.1} parent=1 // pred_check_branch
      %22 = sbr.rel (0) target = $region9
    $region8: #{tpu_custom_call.1} parent=1 // pred_region
      _
    $region9: #{tpu_custom_call.1} parent=1 // pred_fallthru
      _
    // Predicated region
    $region10: #{tpu_custom_call.1} parent=1 // pred_check
      _
    $region11: #{tpu_custom_call.1} parent=1 // pred_check_branch
      %24 = sbr.rel (0) target = $region13
    $region12: #{tpu_custom_call.1} parent=1 // pred_region
      _
    $region13: #{tpu_custom_call.1} parent=1 // pred_fallthru
      _
    // Predicated region
    $region14: #{tpu_custom_call.1} parent=1 // pred_check
      _
    $region15: #{tpu_custom_call.1} parent=1 // pred_check_branch
      %26 = sbr.rel (0) target = $region17
    $region16: #{tpu_custom_call.1} parent=1 // pred_region
      %28 = dma.done [#allocation5], 128
    $region17: #{tpu_custom_call.1} parent=1 // pred_fallthru
      _
    %p29 = scmp.eq.s32.totalorder 0, 0
    // Predicated region
    $region18: #{tpu_custom_call.1} parent=1 // pred_check
      %p30 = pneg %p29
    $region19: #{tpu_custom_call.1} parent=1 // pred_check_branch
      %32 = sbr.rel (%p30) target = $region21
    $region20: #{tpu_custom_call.1} parent=1 // pred_region
      %vm33 = vcmask 7168
      %34 = vst.msk [vmem:[#allocation2] sm:$0xff] %vm33, 0.0
    $region21: #{tpu_custom_call.1} parent=1 // pred_fallthru
      _
    %v35 = vld [vmem:[#allocation2] sm:$0xff]
    %v36 = vld [vmem:[#allocation4] sm:$0xff]
    %v37 = vld [vmem:[%s1] sm:$0x1]
    %v39 = vperm.slane %v37, 0
    %v41 = vmul.f32 %v36, %v39
    %vm42 = vcmask 261120
    %v43 = vsel %vm42, %v41, 0.0
    %44 = vadd.xlane.f32.xlu0 %v43
    %v45 = vpop.xlane.xlu0 %44
    %v46 = vadd.f32 %v35, %v45
    %vm47 = vcmask 7168
    %48 = vst.msk [vmem:[#allocation2] sm:$0xff] %vm47, %v46
    // Predicated region
    $region22: #{tpu_custom_call.1} parent=1 // pred_check
      %p49 = pneg %p29
    $region23: #{tpu_custom_call.1} parent=1 // pred_check_branch
      %51 = sbr.rel (%p49) target = $region25
    $region24: #{tpu_custom_call.1} parent=1 // pred_region
      %v52 = vld [vmem:[#allocation2] sm:$0xff]
      %s53 = sld [smem:[#allocation3]]
      %v54 = vstv %s53
      %v55 = vadd.f32 %v52, %v54
      %v56 = vxor.u32 %v55, 2147483648
      %v57 = vmul.f32 %v56, 1.442695
      %v58 = vpow.pop %v57
      %v59 = vadd.f32 %v58, 1.0
      %v60 = vrcp.pop %v59
      %v61 = vmul.f32 %v59, %v60
      %v62 = vsub.f32 1.0, %v61
      %v63 = vmul.f32 %v60, %v62
      %v64 = vadd.f32 %v60, %v63
      %vm65 = vweird.f32 %v59
      %vm66 = vweird.f32 %v60
      %vm67 = vmor %vm65, %vm66
      %v68 = vsel %vm67, %v60, %v64
      %v69 = vand.u32 2147483647, %v59
      %vm70 = vcmp.eq.f32.partialorder %v69, 8.507059e+37
      %v71 = vand.u32 %v59, 2147483648
      %v72 = vor.u32 1.1754944e-38, %v71
      %v73 = vsel %vm70, %v72, %v68
      %v74 = vmul.f32 1.0, %v73
      %75 = vst.msk [vmem:[%s3] sm:$0xff] %vm47, %v74
    $region25: #{tpu_custom_call.1} parent=1 // pred_fallthru
      _
    // Predicated region
    $region26: #{tpu_custom_call.1} parent=1 // pred_check
      _
    $region27: #{tpu_custom_call.1} parent=1 // pred_check_branch
      %77 = sbr.rel (0) target = $region29
    $region28: #{tpu_custom_call.1} parent=1 // pred_region
      _
    $region29: #{tpu_custom_call.1} parent=1 // pred_fallthru
      _
    // Predicated region
    $region30: #{tpu_custom_call.1} parent=1 // pred_check
      _
    $region31: #{tpu_custom_call.1} parent=1 // pred_check_branch
      %79 = sbr.rel (0) target = $region33
    $region32: #{tpu_custom_call.1} parent=1 // pred_region
      _
    $region33: #{tpu_custom_call.1} parent=1 // pred_fallthru
      _
    %80 = vsyncpa [#allocation5], 1

</llo_original>
